<compile_context>
chip_gen: v6e
topology: v6e:2x2x1
jax: 0.10.0
libtpu: 0.0.40
codegen_flags: <defaults>
</compile_context>

<pallas_src>
import math

import numpy as np
import jax
import jax.numpy as jnp
from jax import lax
from jax.experimental import pallas as pl
from jax.experimental.pallas import tpu as pltpu


# ---------------------------------------------------------------------------
# e3nn-compatible real Wigner 3j symbols (host-side numpy, parameter setup)
# ---------------------------------------------------------------------------
def _su2_cg(j1, m1, j2, m2, j3, m3):
    if m3 != m1 + m2:
        return 0.0
    f = math.factorial
    vmin = int(max(-j1 + j2 + m3, -j1 + m1, 0))
    vmax = int(min(j2 + j3 + m1, j3 - j1 + j2, j3 + m3))
    C = ((2.0 * j3 + 1.0)
         * f(j3 + j1 - j2) * f(j3 - j1 + j2) * f(j1 + j2 - j3)
         * f(j3 + m3) * f(j3 - m3)
         / (f(j1 + j2 + j3 + 1) * f(j1 - m1) * f(j1 + m1)
            * f(j2 - m2) * f(j2 + m2))) ** 0.5
    S = 0.0
    for v in range(vmin, vmax + 1):
        S += ((-1.0) ** (v + j2 + m2)
              * f(j2 + j3 + m1 - v) * f(j1 - m1 + v)
              / (f(v) * f(j3 - j1 + j2 - v) * f(j3 + m3 - v)
                 * f(v + j1 - j2 - m3)))
    return C * S


def _su2_clebsch_gordan(j1, j2, j3):
    mat = np.zeros((2 * j1 + 1, 2 * j2 + 1, 2 * j3 + 1), dtype=np.float64)
    if abs(j1 - j2) <= j3 <= j1 + j2:
        for m1 in range(-j1, j1 + 1):
            for m2 in range(-j2, j2 + 1):
                if abs(m1 + m2) <= j3:
                    mat[m1 + j1, m2 + j2, m1 + m2 + j3] = _su2_cg(
                        j1, m1, j2, m2, j3, m1 + m2)
    return mat / math.sqrt(2 * j3 + 1)


def _change_basis_real_to_complex(l):
    q = np.zeros((2 * l + 1, 2 * l + 1), dtype=np.complex128)
    for m in range(-l, 0):
        q[l + m, l + abs(m)] = 1.0 / 2 ** 0.5
        q[l + m, l - abs(m)] = -1j / 2 ** 0.5
    q[l, l] = 1.0
    for m in range(1, l + 1):
        q[l + m, l + abs(m)] = (-1) ** m / 2 ** 0.5
        q[l + m, l - abs(m)] = 1j * (-1) ** m / 2 ** 0.5
    return (-1j) ** l * q


def wigner_3j(l1, l2, l3):
    Q1 = _change_basis_real_to_complex(l1)
    Q2 = _change_basis_real_to_complex(l2)
    Q3 = _change_basis_real_to_complex(l3)
    C = _su2_clebsch_gordan(l1, l2, l3).astype(np.complex128)
    C = np.einsum("ij,kl,mn,ikn->jlm", Q1, Q2, np.conj(Q3.T), C)
    assert np.all(np.abs(C.imag) < 1e-5)
    C = np.real(C)
    return C / np.linalg.norm(C)


# ---------------------------------------------------------------------------
# TRIrreps-style problem definition (mul, l, parity) + time-reversal parities
# ---------------------------------------------------------------------------
IRREPS_IN1 = [(4, 0, 1), (4, 1, -1)]   # "4x0e + 4x1o"
TR_IN1 = [1, -1]                       # E, O
IRREPS_IN2 = [(4, 0, 1), (4, 1, -1)]   # "4x0e + 4x1o"
TR_IN2 = [1, -1]
IRREPS_OUT = [(8, 0, 1), (8, 1, -1), (4, 2, 1)]   # "8x0e + 8x1o + 4x2e"
TR_OUT = [1, -1, 1]


def irreps_dim(irreps):
    return sum(mul * (2 * l + 1) for mul, l, _ in irreps)


def irreps_offsets(irreps):
    offs, o = [], 0
    for mul, l, _ in irreps:
        offs.append(o)
        o += mul * (2 * l + 1)
    return offs


def build_instructions():
    instr = []
    for i1, (m1, l1, p1) in enumerate(IRREPS_IN1):
        for i2, (m2, l2, p2) in enumerate(IRREPS_IN2):
            for io, (mo, lo, po) in enumerate(IRREPS_OUT):
                if (abs(l1 - l2) <= lo <= l1 + l2 and po == p1 * p2
                        and TR_OUT[io] == TR_IN1[i1] * TR_IN2[i2]):
                    instr.append((i1, i2, io))
    out_set = {io for _, _, io in instr}
    assert len(out_set) == len(IRREPS_OUT), "Not all output irreps are used"
    return instr


def path_coefficients(instr):
    # e3nn: irrep_normalization='component', path_normalization='element',
    # in/out variances = 1, path_weight = 1.0, connection_mode 'uvw'.
    coeffs = []
    for (i1, i2, io) in instr:
        x = sum(IRREPS_IN1[j1][0] * IRREPS_IN2[j2][0]
                for (j1, j2, jo) in instr if jo == io)
        alpha = (2 * IRREPS_OUT[io][1] + 1) / x
        coeffs.append(math.sqrt(alpha))
    return coeffs


def init_weights(key, instr):
    w1s, w2s = [], []
    for (i1, i2, io) in instr:
        key, k1, k2 = jax.random.split(key, 3)
        w1s.append(jax.random.normal(k1, (IRREPS_IN1[i1][0], IRREPS_OUT[io][0]),
                                     jnp.float32))
        w2s.append(jax.random.normal(k2, (IRREPS_IN2[i2][0], IRREPS_OUT[io][0]),
                                     jnp.float32))
    return key, w1s, w2s


def build_w_big(instr, coeffs, w1s, w2s):
    D1, D2, DO = irreps_dim(IRREPS_IN1), irreps_dim(IRREPS_IN2), irreps_dim(IRREPS_OUT)
    o1, o2, oo = irreps_offsets(IRREPS_IN1), irreps_offsets(IRREPS_IN2), irreps_offsets(IRREPS_OUT)
    W = np.zeros((D1, D2, DO), np.float64)
    for (i1, i2, io), c, w1, w2 in zip(instr, coeffs, w1s, w2s):
        m1, l1, _ = IRREPS_IN1[i1]
        m2, l2, _ = IRREPS_IN2[i2]
        mo, lo, _ = IRREPS_OUT[io]
        d1, d2, do = 2 * l1 + 1, 2 * l2 + 1, 2 * lo + 1
        cg = wigner_3j(l1, l2, lo)
        blk = c * np.einsum("uw,vw,ijk->uivjwk",
                            np.asarray(w1, np.float64),
                            np.asarray(w2, np.float64), cg)
        blk = blk.reshape(m1 * d1, m2 * d2, mo * do)
        W[o1[i1]:o1[i1] + m1 * d1,
          o2[i2]:o2[i2] + m2 * d2,
          oo[io]:oo[io] + mo * do] += blk
    return W  # host numpy (D1, D2, DO)


def build_kernel_operands(w_big_np):
    """Host-side: flatten W[a,b,c] -> W2d[a*D2+b, c].

    Row order matches the in-kernel outer-product feature order.  No lane
    padding of the output axis: the kernel stores the true DO-wide block, so
    no wrapper-side depad slice is needed (the masked <128-lane stores are
    hidden under MXU time; this kernel is compute-bound)."""
    D1, D2, DO = w_big_np.shape
    return jnp.asarray(w_big_np.reshape(D1 * D2, DO), jnp.float32)


# ---------------------------------------------------------------------------
# Pallas kernel: per batch tile, one real MXU contraction.
#   xx[n, a*D2+b] = x1[n,a] * x2[n,b]    (VPU/XLU: broadcast-mul + lane concat)
#   out = xx @ W2d                        (single MXU matmul, K = D1*D2 = 256)
# ---------------------------------------------------------------------------
def _trtp_kernel(x1_ref, x2_ref, w_ref, o_ref):
    x1 = x1_ref[...].astype(jnp.float32)          # (tn, D1)
    x2 = x2_ref[...].astype(jnp.float32)          # (tn, D2)
    d1 = x1.shape[1]

    # Outer-product features built off the MXU: the previous version burned
    # two extra MXU passes per tile on 0/1 "selection" matmuls; VPU/XLU slots
    # are otherwise idle here, so this is (nearly) free.
    xx = jnp.concatenate([x1[:, a:a + 1] * x2 for a in range(d1)], axis=1)

    # Explicit precision: HIGHEST => multi-pass f32-accurate MXU decomposition.
    # Deliberately NOT bf16 single-pass: rounding x1/x2/W to bf16 (~2^-9 rel)
    # would break the 2e-4 tolerance against the f32 reference.
    out = jnp.dot(xx, w_ref[...],
                  preferred_element_type=jnp.float32,
                  precision=lax.Precision.HIGHEST)
    o_ref[...] = out.astype(o_ref.dtype)


def _choose_tile(n, tn):
    """Batch tile: multiple of 8 (or == n when n <= 8), capped so the grid has
    at least two steps when the batch allows it -> both v7x TensorCores get
    work via dimension_semantics=('parallel',)."""
    if n <= 8:
        return n
    tn = max(8, min(tn, n))
    half = -(-((n + 1) // 2) // 8) * 8      # ceil(ceil(n/2) / 8) * 8
    tn = min(tn, half)
    return max(8, (tn // 8) * 8)


def tr_separate_weight_tp(x1, x2, w2d, *, tn=1024):
    """Applies the shared-weight tensor product.  x1:(N,D1), x2:(N,D2)."""
    N, D1 = x1.shape
    D2 = x2.shape[1]
    K, DO = w2d.shape
    assert K == D1 * D2

    tn = _choose_tile(N, tn)
    grid = (pl.cdiv(N, tn),)   # partial last block is masked by Pallas; each
                               # output row depends only on its own input row.

    return pl.pallas_call(
        _trtp_kernel,
        out_shape=jax.ShapeDtypeStruct((N, DO), x1.dtype),
        grid=grid,
        in_specs=[
            pl.BlockSpec((tn, D1), lambda i: (i, 0)),
            pl.BlockSpec((tn, D2), lambda i: (i, 0)),
            # Constant weight block: same index every step -> stays resident.
            # (pipeline_mode=pl.Buffered(1) would save one ~53 KB buffer; left
            #  at the default double-buffer for maximum portability.)
            pl.BlockSpec((K, DO), lambda i: (0, 0)),
        ],
        out_specs=pl.BlockSpec((tn, DO), lambda i: (i, 0)),
        compiler_params=pltpu.CompilerParams(
            dimension_semantics=("parallel",),
            # Explicit limit: safe for tn<=2048 on every generation, including
            # v5e's 16 MiB scoped default and v7x's 64 MiB physical VMEM.
            vmem_limit_bytes=32 * 1024 * 1024,
        ),
    )(x1, x2, w2d)


# ---------------------------------------------------------------------------
# Pure-JAX reference following the per-instruction e3nn formula
# ---------------------------------------------------------------------------
def reference(x1, x2, instr, coeffs, w1s, w2s):
    N = x1.shape[0]
    DO = irreps_dim(IRREPS_OUT)
    o1, o2, oo = irreps_offsets(IRREPS_IN1), irreps_offsets(IRREPS_IN2), irreps_offsets(IRREPS_OUT)
    out = jnp.zeros((N, DO), jnp.float32)
    for (i1, i2, io), c, w1, w2 in zip(instr, coeffs, w1s, w2s):
        m1, l1, _ = IRREPS_IN1[i1]
        m2, l2, _ = IRREPS_IN2[i2]
        mo, lo, _ = IRREPS_OUT[io]
        d1, d2, do = 2 * l1 + 1, 2 * l2 + 1, 2 * lo + 1
        xb1 = x1[:, o1[i1]:o1[i1] + m1 * d1].reshape(N, m1, d1)
        xb2 = x2[:, o2[i2]:o2[i2] + m2 * d2].reshape(N, m2, d2)
        cg = jnp.asarray(wigner_3j(l1, l2, lo), jnp.float32)
        res = c * jnp.einsum("uw,vw,nui,nvj,ijk->nwk", w1, w2, xb1, xb2, cg,
                             precision=lax.Precision.HIGHEST)
        out = out.at[:, oo[io]:oo[io] + mo * do].add(res.reshape(N, mo * do))
    return out


if __name__ == "__main__":
    instr = build_instructions()
    coeffs = path_coefficients(instr)

    key = jax.random.PRNGKey(0)
    key, w1s, w2s = init_weights(key, instr)

    N = 16
    D1, D2 = irreps_dim(IRREPS_IN1), irreps_dim(IRREPS_IN2)
    key, kx1, kx2 = jax.random.split(key, 3)
    x1 = jax.random.normal(kx1, (N, D1), jnp.float32)
    x2 = jax.random.normal(kx2, (N, D2), jnp.float32)

    w_big = build_w_big(instr, coeffs, w1s, w2s)
    w2d = build_kernel_operands(w_big)

    # Tile auto-clamps to 8 at this demo size -> grid of 2 (both v7x TCs).
    # For realistic batches the default tn=1024 is used.
    out = tr_separate_weight_tp(x1, x2, w2d)
    out = jax.block_until_ready(out)

    ref = jax.block_until_ready(reference(x1, x2, instr, coeffs, w1s, w2s))
    np.testing.assert_allclose(np.asarray(out), np.asarray(ref),
                               rtol=2e-4, atol=2e-4)
    print("KERNEL_OK")
</pallas_src>

<mosaic_0001>
module attributes {stable_mosaic.version = 11 : i64} {
  func.func @_trtp_kernel(%arg0: i32, %arg1: memref<8x16xf32, #tpu.memory_space<vmem>>, %arg2: memref<8x16xf32, #tpu.memory_space<vmem>>, %arg3: memref<256x52xf32, #tpu.memory_space<vmem>>, %arg4: memref<8x52xf32, #tpu.memory_space<vmem>>) attributes {dimension_semantics = [#tpu.dimension_semantics<parallel>], iteration_bounds = array<i64: 2>, scalar_prefetch = 0 : i64, scratch_operands = 0 : i64, tpu.core_type = #tpu.core_type<tc>, window_params = [{transform_indices = @transform_0, window_bounds = array<i64: 8, 16>}, {transform_indices = @transform_1, window_bounds = array<i64: 8, 16>}, {pipeline_mode = #tpu.pipeline_mode<synchronous>, transform_indices = @transform_2, window_bounds = array<i64: 256, 52>}, {transform_indices = @transform_3, window_bounds = array<i64: 8, 52>}]} {
    %c0 = arith.constant 0 : index
    %c0_0 = arith.constant 0 : index
    %0 = vector.load %arg1[%c0, %c0_0] : memref<8x16xf32, #tpu.memory_space<vmem>>, vector<8x16xf32>
    %c0_1 = arith.constant 0 : index
    %c0_2 = arith.constant 0 : index
    %1 = vector.load %arg2[%c0_1, %c0_2] : memref<8x16xf32, #tpu.memory_space<vmem>>, vector<8x16xf32>
    %2 = vector.extract_strided_slice %0 {offsets = [0, 0], sizes = [8, 1], strides = [1, 1]} : vector<8x16xf32> to vector<8x1xf32>
    %3 = vector.broadcast %2 : vector<8x1xf32> to vector<8x16xf32>
    %4 = arith.mulf %3, %1 : vector<8x16xf32>
    %5 = vector.extract_strided_slice %0 {offsets = [0, 1], sizes = [8, 1], strides = [1, 1]} : vector<8x16xf32> to vector<8x1xf32>
    %6 = vector.broadcast %5 : vector<8x1xf32> to vector<8x16xf32>
    %7 = arith.mulf %6, %1 : vector<8x16xf32>
    %8 = vector.extract_strided_slice %0 {offsets = [0, 2], sizes = [8, 1], strides = [1, 1]} : vector<8x16xf32> to vector<8x1xf32>
    %9 = vector.broadcast %8 : vector<8x1xf32> to vector<8x16xf32>
    %10 = arith.mulf %9, %1 : vector<8x16xf32>
    %11 = vector.extract_strided_slice %0 {offsets = [0, 3], sizes = [8, 1], strides = [1, 1]} : vector<8x16xf32> to vector<8x1xf32>
    %12 = vector.broadcast %11 : vector<8x1xf32> to vector<8x16xf32>
    %13 = arith.mulf %12, %1 : vector<8x16xf32>
    %14 = vector.extract_strided_slice %0 {offsets = [0, 4], sizes = [8, 1], strides = [1, 1]} : vector<8x16xf32> to vector<8x1xf32>
    %15 = vector.broadcast %14 : vector<8x1xf32> to vector<8x16xf32>
    %16 = arith.mulf %15, %1 : vector<8x16xf32>
    %17 = vector.extract_strided_slice %0 {offsets = [0, 5], sizes = [8, 1], strides = [1, 1]} : vector<8x16xf32> to vector<8x1xf32>
    %18 = vector.broadcast %17 : vector<8x1xf32> to vector<8x16xf32>
    %19 = arith.mulf %18, %1 : vector<8x16xf32>
    %20 = vector.extract_strided_slice %0 {offsets = [0, 6], sizes = [8, 1], strides = [1, 1]} : vector<8x16xf32> to vector<8x1xf32>
    %21 = vector.broadcast %20 : vector<8x1xf32> to vector<8x16xf32>
    %22 = arith.mulf %21, %1 : vector<8x16xf32>
    %23 = vector.extract_strided_slice %0 {offsets = [0, 7], sizes = [8, 1], strides = [1, 1]} : vector<8x16xf32> to vector<8x1xf32>
    %24 = vector.broadcast %23 : vector<8x1xf32> to vector<8x16xf32>
    %25 = arith.mulf %24, %1 : vector<8x16xf32>
    %26 = vector.extract_strided_slice %0 {offsets = [0, 8], sizes = [8, 1], strides = [1, 1]} : vector<8x16xf32> to vector<8x1xf32>
    %27 = vector.broadcast %26 : vector<8x1xf32> to vector<8x16xf32>
    %28 = arith.mulf %27, %1 : vector<8x16xf32>
    %29 = vector.extract_strided_slice %0 {offsets = [0, 9], sizes = [8, 1], strides = [1, 1]} : vector<8x16xf32> to vector<8x1xf32>
    %30 = vector.broadcast %29 : vector<8x1xf32> to vector<8x16xf32>
    %31 = arith.mulf %30, %1 : vector<8x16xf32>
    %32 = vector.extract_strided_slice %0 {offsets = [0, 10], sizes = [8, 1], strides = [1, 1]} : vector<8x16xf32> to vector<8x1xf32>
    %33 = vector.broadcast %32 : vector<8x1xf32> to vector<8x16xf32>
    %34 = arith.mulf %33, %1 : vector<8x16xf32>
    %35 = vector.extract_strided_slice %0 {offsets = [0, 11], sizes = [8, 1], strides = [1, 1]} : vector<8x16xf32> to vector<8x1xf32>
    %36 = vector.broadcast %35 : vector<8x1xf32> to vector<8x16xf32>
    %37 = arith.mulf %36, %1 : vector<8x16xf32>
    %38 = vector.extract_strided_slice %0 {offsets = [0, 12], sizes = [8, 1], strides = [1, 1]} : vector<8x16xf32> to vector<8x1xf32>
    %39 = vector.broadcast %38 : vector<8x1xf32> to vector<8x16xf32>
    %40 = arith.mulf %39, %1 : vector<8x16xf32>
    %41 = vector.extract_strided_slice %0 {offsets = [0, 13], sizes = [8, 1], strides = [1, 1]} : vector<8x16xf32> to vector<8x1xf32>
    %42 = vector.broadcast %41 : vector<8x1xf32> to vector<8x16xf32>
    %43 = arith.mulf %42, %1 : vector<8x16xf32>
    %44 = vector.extract_strided_slice %0 {offsets = [0, 14], sizes = [8, 1], strides = [1, 1]} : vector<8x16xf32> to vector<8x1xf32>
    %45 = vector.broadcast %44 : vector<8x1xf32> to vector<8x16xf32>
    %46 = arith.mulf %45, %1 : vector<8x16xf32>
    %47 = vector.extract_strided_slice %0 {offsets = [0, 15], sizes = [8, 1], strides = [1, 1]} : vector<8x16xf32> to vector<8x1xf32>
    %48 = vector.broadcast %47 : vector<8x1xf32> to vector<8x16xf32>
    %49 = arith.mulf %48, %1 : vector<8x16xf32>
    %50 = tpu.concatenate %4, %7, %10, %13, %16, %19, %22, %25, %28, %31, %34, %37, %40, %43, %46, %49 in 1 : vector<8x16xf32>, vector<8x16xf32>, vector<8x16xf32>, vector<8x16xf32>, vector<8x16xf32>, vector<8x16xf32>, vector<8x16xf32>, vector<8x16xf32>, vector<8x16xf32>, vector<8x16xf32>, vector<8x16xf32>, vector<8x16xf32>, vector<8x16xf32>, vector<8x16xf32>, vector<8x16xf32>, vector<8x16xf32> -> vector<8x256xf32>
    %c0_3 = arith.constant 0 : index
    %c0_4 = arith.constant 0 : index
    %51 = vector.load %arg3[%c0_3, %c0_4] : memref<256x52xf32, #tpu.memory_space<vmem>>, vector<256x52xf32>
    %cst = arith.constant dense<0.000000e+00> : vector<8x52xf32>
    %52 = tpu.matmul %50, %51, %cst {dimension_numbers = #tpu.dot_dimension_numbers<[1], [0], [0], [1], [0, 0, 1, 1], [], []>, precision = #tpu.contract_precision<fp32>} : vector<8x256xf32>, vector<256x52xf32>, vector<8x52xf32> -> vector<8x52xf32>
    %c0_5 = arith.constant 0 : index
    %c0_6 = arith.constant 0 : index
    %53 = vector.load %arg4[%c0_5, %c0_6] : memref<8x52xf32, #tpu.memory_space<vmem>>, vector<8x52xf32>
    tpu.vector_store %arg4[%c0_5, %c0_6], %52 {strides = array<i32>} : memref<8x52xf32, #tpu.memory_space<vmem>>, vector<8x52xf32>,
    return
  }
  func.func @transform_0(%arg0: i32) -> (i32, i32) {
    %c0_i32 = arith.constant 0 : i32
    %c0_i32_0 = arith.constant 0 : i32
    return %arg0, %c0_i32 : i32, i32
  }
  func.func @transform_1(%arg0: i32) -> (i32, i32) {
    %c0_i32 = arith.constant 0 : i32
    %c0_i32_0 = arith.constant 0 : i32
    return %arg0, %c0_i32 : i32, i32
  }
  func.func @transform_2(%arg0: i32) -> (i32, i32) {
    %c0_i32 = arith.constant 0 : i32
    %c0_i32_0 = arith.constant 0 : i32
    %c0_i32_1 = arith.constant 0 : i32
    return %c0_i32, %c0_i32_0 : i32, i32
  }
  func.func @transform_3(%arg0: i32) -> (i32, i32) {
    %c0_i32 = arith.constant 0 : i32
    %c0_i32_0 = arith.constant 0 : i32
    return %arg0, %c0_i32 : i32, i32
  }
}

</mosaic_0001>

<llo_original>
// kernel: tpu_custom_call.1
$region0: #{tpu_custom_call.1}
  #allocation0 [shape = 'u32[]', space=smem, size = 0x4, offset = 0x4, fixed_abs, tag = 'smem constant byte address 0x4 - core index']
  #allocation1 [shape = 'u32[144,128]{1,0:T(1,128)}', space=vmem, size = 0x12000, scoped, tag = 'internal scratch']
  %s0 = inlined_call_operand.vmem [shape: f32[16,16], index: 0, kind: input, shape index: {}]
  %s1 = inlined_call_operand.vmem [shape: f32[16,16], index: 1, kind: input, shape index: {}]
  %s2 = inlined_call_operand.vmem [shape: f32[256,52], index: 2, kind: input, shape index: {}]
  %s3 = inlined_call_operand.hbm [shape: f32[16,52], index: 3, kind: output, shape index: {}]
  %s4 = sld [smem:[#allocation0]]
  $region45: #{tpu_custom_call.1} parent=0
    _
  %s6 = ssub.s32 1, %s4
  %s7 = scalar_select 0, %s6, %s4
  $region1: #{tpu_custom_call.1} parent=0
    #allocation2 [shape = 'u8[8192]{0}', space=vmem, size = 0x2000, scoped, tag = 'output window, operand 0']
    #allocation3 [shape = 's32[2]{0}', space=sflag, size = 0x8, scoped, tag = 'scoped memory for tpu_custom_call.1']
    %8 = vsyncpa [#allocation3], 0
    %s9 = scalar_lea.sflag [#allocation3], 1
    %10 = vsyncpa %s9, 0
    loop: start=0, step=1, limit=4
    $region2: #{tpu_custom_call.1} parent=1 // loop_pre_header
      _
    $region3: #{tpu_custom_call.1} parent=1 // loop_header
      %s12 = sphi 0, %s16
      %p13 = scmp.ge.s32.totalorder %s12, 4
      %s22 = sphi 0, %s24
      %s25 = sphi 0, %s22
      %s26 = sphi 0, %s25
      %s42 = sphi 0, %s26
      %s48 = sphi 0, %s50
      %s51 = sphi 0, %s48
      %s52 = sphi 0, %s51
      %s68 = sphi 0, %s52
      %s72 = sphi 0, %s72
      %s74 = sphi 0, %s72
      %s75 = sphi 0, %s74
      %s89 = sphi 0, %s75
      %s95 = sphi 0, %s97
      %s98 = sphi 0, %s95
      %s99 = sphi 0, %s98
      %s115 = sphi 0, %s99
    $region4: #{tpu_custom_call.1} parent=1 // loop_header_branch
      %15 = sbr.rel (%p13) target = $region8
    $region5: #{tpu_custom_call.1} parent=1 // loop_body
      %s17 = ssub.s32 %s12, 1
      %s18 = ssub.s32 %s12, 2
      %s19 = sadd.s32 %s12, 1
      %s20 = ssub.s32 %s12, %s19
      %p21 = scmp.eq.s32.totalorder %s20, 0
      %s23 = sadd.s32 %s22, 1
      %s24 = scalar_select %p21, %s22, %s23
      %p27 = pneg %p21
      %p28 = scmp.eq.s32.totalorder %s12, 1
      %p29 = por %p27, %p28
      %p30 = scmp.ne.s32.totalorder %s22, %s25
      %p31 = scmp.eq.s32.totalorder %s12, 0
      %p32 = por %p30, %p31
      %p33 = scmp.ne.s32.totalorder %s22, %s25
      %p34 = scmp.eq.s32.totalorder %s17, 1
      %p35 = por %p33, %p34
      %p36 = scmp.ne.s32.totalorder %s25, %s26
      %p37 = scmp.eq.s32.totalorder %s17, 0
      %p38 = por %p36, %p37
      %p39 = scmp.ne.s32.totalorder %s25, %s26
      %p40 = scmp.eq.s32.totalorder %s18, 1
      %p41 = por %p39, %p40
      %p43 = scmp.ne.s32.totalorder %s26, %s42
      %p44 = scmp.eq.s32.totalorder %s18, 0
      %p45 = por %p43, %p44
      %s46 = ssub.s32 %s12, %s19
      %p47 = scmp.eq.s32.totalorder %s46, 0
      %s49 = sadd.s32 %s48, 1
      %s50 = scalar_select %p47, %s48, %s49
      %p53 = pneg %p47
      %p54 = scmp.eq.s32.totalorder %s12, 1
      %p55 = por %p53, %p54
      %p56 = scmp.ne.s32.totalorder %s48, %s51
      %p57 = scmp.eq.s32.totalorder %s12, 0
      %p58 = por %p56, %p57
      %p59 = scmp.ne.s32.totalorder %s48, %s51
      %p60 = scmp.eq.s32.totalorder %s17, 1
      %p61 = por %p59, %p60
      %p62 = scmp.ne.s32.totalorder %s51, %s52
      %p63 = scmp.eq.s32.totalorder %s17, 0
      %p64 = por %p62, %p63
      %p65 = scmp.ne.s32.totalorder %s51, %s52
      %p66 = scmp.eq.s32.totalorder %s18, 1
      %p67 = por %p65, %p66
      %p69 = scmp.ne.s32.totalorder %s52, %s68
      %p70 = scmp.eq.s32.totalorder %s18, 0
      %p71 = por %p69, %p70
      %s73 = sadd.s32 %s72, 1
      %p76 = scmp.eq.s32.totalorder %s12, 1
      %p77 = scmp.ne.s32.totalorder %s72, %s74
      %p78 = scmp.eq.s32.totalorder %s12, 0
      %p79 = por %p77, %p78
      %p80 = scmp.ne.s32.totalorder %s72, %s74
      %p81 = scmp.eq.s32.totalorder %s17, 1
      %p82 = por %p80, %p81
      %p83 = scmp.ne.s32.totalorder %s74, %s75
      %p84 = scmp.eq.s32.totalorder %s17, 0
      %p85 = por %p83, %p84
      %p86 = scmp.ne.s32.totalorder %s74, %s75
      %p87 = scmp.eq.s32.totalorder %s18, 1
      %p88 = por %p86, %p87
      %p90 = scmp.ne.s32.totalorder %s75, %s89
      %p91 = scmp.eq.s32.totalorder %s18, 0
      %p92 = por %p90, %p91
      %s93 = ssub.s32 %s12, %s19
      %p94 = scmp.eq.s32.totalorder %s93, 0
      %s96 = sadd.s32 %s95, 1
      %s97 = scalar_select %p94, %s95, %s96
      %p100 = pneg %p94
      %p101 = scmp.eq.s32.totalorder %s12, 1
      %p102 = por %p100, %p101
      %p103 = scmp.ne.s32.totalorder %s95, %s98
      %p104 = scmp.eq.s32.totalorder %s12, 0
      %p105 = por %p103, %p104
      %p106 = scmp.ne.s32.totalorder %s95, %s98
      %p107 = scmp.eq.s32.totalorder %s17, 1
      %p108 = por %p106, %p107
      %p109 = scmp.ne.s32.totalorder %s98, %s99
      %p110 = scmp.eq.s32.totalorder %s17, 0
      %p111 = por %p109, %p110
      %p112 = scmp.ne.s32.totalorder %s98, %s99
      %p113 = scmp.eq.s32.totalorder %s18, 1
      %p114 = por %p112, %p113
      %p116 = scmp.ne.s32.totalorder %s99, %s115
      %p117 = scmp.eq.s32.totalorder %s18, 0
      %p118 = por %p116, %p117
      %p119 = scmp.le.s32.totalorder 1, %s12
      %p120 = scmp.lt.s32.totalorder %s12, 3
      %p121 = pnand %p119, %p120
      %p122 = pneg %p121
      // Predicated region
      $region9: #{tpu_custom_call.1} parent=5 // pred_check
        _
      $region10: #{tpu_custom_call.1} parent=5 // pred_check_branch
        %124 = sbr.rel (%p121) target = $region12
      $region11: #{tpu_custom_call.1} parent=5 // pred_region
        %s125 = ssub.s32 %s12, 1
        // Predicated region
        $region13: #{tpu_custom_call.1} parent=11 // pred_check
          %p126 = pneg %p85
        $region14: #{tpu_custom_call.1} parent=11 // pred_check_branch
          %128 = sbr.rel (%p126) target = $region16
        $region15: #{tpu_custom_call.1} parent=11 // pred_region
          _
        $region16: #{tpu_custom_call.1} parent=11 // pred_fallthru
          _
      $region12: #{tpu_custom_call.1} parent=5 // pred_fallthru
        _
      %p129 = scmp.lt.s32.totalorder %s12, 2
      // Predicated region
      $region17: #{tpu_custom_call.1} parent=5 // pred_check
        %p130 = pneg %p129
      $region18: #{tpu_custom_call.1} parent=5 // pred_check_branch
        %132 = sbr.rel (%p130) target = $region20
      $region19: #{tpu_custom_call.1} parent=5 // pred_region
        // Predicated region
        $region21: #{tpu_custom_call.1} parent=19 // pred_check
          %p133 = pneg %p32
        $region22: #{tpu_custom_call.1} parent=19 // pred_check_branch
          %135 = sbr.rel (%p133) target = $region24
        $region23: #{tpu_custom_call.1} parent=19 // pred_region
          %p136 = scmp.lt.s32.totalorder %s12, 1
          %s137 = scalar_select %p136, %s12, 1
          %s138 = smul.addr %s137, 8
          %s139 = scalar_lea.vmem %s0, %s138
        $region24: #{tpu_custom_call.1} parent=19 // pred_fallthru
          _
        // Predicated region
        $region25: #{tpu_custom_call.1} parent=19 // pred_check
          %p140 = pneg %p58
        $region26: #{tpu_custom_call.1} parent=19 // pred_check_branch
          %142 = sbr.rel (%p140) target = $region28
        $region27: #{tpu_custom_call.1} parent=19 // pred_region
          %p143 = scmp.lt.s32.totalorder %s12, 1
          %s144 = scalar_select %p143, %s12, 1
          %s145 = smul.addr %s144, 8
          %s146 = scalar_lea.vmem %s1, %s145
        $region28: #{tpu_custom_call.1} parent=19 // pred_fallthru
          _
      $region20: #{tpu_custom_call.1} parent=5 // pred_fallthru
        _
      %p147 = scmp.le.s32.totalorder 1, %s12
      %p148 = scmp.lt.s32.totalorder %s12, 3
      %p149 = pnand %p147, %p148
      %p150 = pneg %p149
      // Predicated region
      $region29: #{tpu_custom_call.1} parent=5 // pred_check
        _
      $region30: #{tpu_custom_call.1} parent=5 // pred_check_branch
        %152 = sbr.rel (%p149) target = $region32
      $region31: #{tpu_custom_call.1} parent=5 // pred_region
        %s153 = ssub.s32 %s12, 1
        %p154 = scmp.lt.s32.totalorder %s17, 1
        %s155 = scalar_select %p154, %s17, 1
        %s156 = smul.addr %s155, 8
        %s157 = scalar_lea.vmem %s0, %s156
        %p158 = pneg %p38
        %p159 = pneg %p35
        %p160 = scmp.lt.s32.totalorder %s17, 1
        %s161 = scalar_select %p160, %s17, 1
        %s162 = smul.addr %s161, 8
        %s163 = scalar_lea.vmem %s1, %s162
        %p164 = pneg %p64
        %p165 = pneg %p61
        %p166 = pneg %p85
        %p167 = pneg %p82
        %p168 = pneg %p111
        %p169 = pneg %p108
        %s170 = sand.u32 %s98, 1
        %s171 = scalar_lea.sflag [#allocation3], %s170
        %s172 = sand.u32 %s98, 1
        %s173 = smul.addr %s172, 8
        %s174 = scalar_lea.vmem [#allocation2], %s173
        %p175 = scmp.lt.s32.totalorder %s17, 1
        %s176 = scalar_select %p175, %s17, 1
        %s177 = smul.addr %s176, 8
        %s178 = scalar_lea.vmem %s0, %s177
        %p179 = scmp.lt.s32.totalorder %s17, 1
        %s180 = scalar_select %p179, %s17, 1
        %s181 = smul.addr %s180, 8
        %s182 = scalar_lea.vmem %s1, %s181
        %v183 = vld [vmem:[%s178] sm:$0xff]
        %v184 = vld [vmem:[%s182] sm:$0xff]
        %186 = vset.pattern.permute.xlu0 0
        %187 = vperm.xlu0 %186, %v183
        %v188 = vpop.permute.xlu0 %187
        %v190 = vmul.f32 %v188, %v184
        %191 = vset.pattern.permute.xlu0 1
        %192 = vperm.xlu0 %191, %v183
        %v193 = vpop.permute.xlu0 %192
        %v195 = vmul.f32 %v193, %v184
        %196 = vset.pattern.permute.xlu0 2
        %197 = vperm.xlu0 %196, %v183
        %v198 = vpop.permute.xlu0 %197
        %v200 = vmul.f32 %v198, %v184
        %201 = vset.pattern.permute.xlu0 3
        %202 = vperm.xlu0 %201, %v183
        %v203 = vpop.permute.xlu0 %202
        %v205 = vmul.f32 %v203, %v184
        %206 = vset.pattern.permute.xlu0 4
        %207 = vperm.xlu0 %206, %v183
        %v208 = vpop.permute.xlu0 %207
        %v210 = vmul.f32 %v208, %v184
        %211 = vset.pattern.permute.xlu0 5
        %212 = vperm.xlu0 %211, %v183
        %v213 = vpop.permute.xlu0 %212
        %v215 = vmul.f32 %v213, %v184
        %216 = vset.pattern.permute.xlu0 6
        %217 = vperm.xlu0 %216, %v183
        %v218 = vpop.permute.xlu0 %217
        %v220 = vmul.f32 %v218, %v184
        %221 = vset.pattern.permute.xlu0 7
        %222 = vperm.xlu0 %221, %v183
        %v223 = vpop.permute.xlu0 %222
        %v225 = vmul.f32 %v223, %v184
        %226 = vset.pattern.permute.xlu0 8
        %227 = vperm.xlu0 %226, %v183
        %v228 = vpop.permute.xlu0 %227
        %v230 = vmul.f32 %v228, %v184
        %231 = vset.pattern.permute.xlu0 9
        %232 = vperm.xlu0 %231, %v183
        %v233 = vpop.permute.xlu0 %232
        %v235 = vmul.f32 %v233, %v184
        %236 = vset.pattern.permute.xlu0 10
        %237 = vperm.xlu0 %236, %v183
        %v238 = vpop.permute.xlu0 %237
        %v240 = vmul.f32 %v238, %v184
        %241 = vset.pattern.permute.xlu0 11
        %242 = vperm.xlu0 %241, %v183
        %v243 = vpop.permute.xlu0 %242
        %v245 = vmul.f32 %v243, %v184
        %246 = vset.pattern.permute.xlu0 12
        %247 = vperm.xlu0 %246, %v183
        %v248 = vpop.permute.xlu0 %247
        %v250 = vmul.f32 %v248, %v184
        %251 = vset.pattern.permute.xlu0 13
        %252 = vperm.xlu0 %251, %v183
        %v253 = vpop.permute.xlu0 %252
        %v255 = vmul.f32 %v253, %v184
        %256 = vset.pattern.permute.xlu0 14
        %257 = vperm.xlu0 %256, %v183
        %v258 = vpop.permute.xlu0 %257
        %v260 = vmul.f32 %v258, %v184
        %261 = vset.pattern.permute.xlu0 15
        %262 = vperm.xlu0 %261, %v183
        %v263 = vpop.permute.xlu0 %262
        %v265 = vmul.f32 %v263, %v184
        %267 = vrot.lane.b32.xlu0 %v195, 16
        %v268 = vpop.permute.xlu0 %267
        %271 = vrot.lane.b32.xlu0 %v200, 32
        %v272 = vpop.permute.xlu0 %271
        %275 = vrot.lane.b32.xlu0 %v205, 48
        %v276 = vpop.permute.xlu0 %275
        %279 = vrot.lane.b32.xlu0 %v210, 64
        %v280 = vpop.permute.xlu0 %279
        %283 = vrot.lane.b32.xlu0 %v215, 80
        %v284 = vpop.permute.xlu0 %283
        %287 = vrot.lane.b32.xlu0 %v220, 96
        %v288 = vpop.permute.xlu0 %287
        %291 = vrot.lane.b32.xlu0 %v225, 112
        %v292 = vpop.permute.xlu0 %291
        %295 = vrot.lane.b32.xlu0 %v235, 16
        %v296 = vpop.permute.xlu0 %295
        %299 = vrot.lane.b32.xlu0 %v240, 32
        %v300 = vpop.permute.xlu0 %299
        %303 = vrot.lane.b32.xlu0 %v245, 48
        %v304 = vpop.permute.xlu0 %303
        %307 = vrot.lane.b32.xlu0 %v250, 64
        %v308 = vpop.permute.xlu0 %307
        %311 = vrot.lane.b32.xlu0 %v255, 80
        %v312 = vpop.permute.xlu0 %311
        %315 = vrot.lane.b32.xlu0 %v260, 96
        %v316 = vpop.permute.xlu0 %315
        %319 = vrot.lane.b32.xlu0 %v265, 112
        %v320 = vpop.permute.xlu0 %319
        %vm322 = vcmask 130048
        %v323 = vsel %vm322, %v190, %v268
        %vm324 = vcmask 261120
        %v325 = vsel %vm324, %v323, %v272
        %vm326 = vcmask 392192
        %v327 = vsel %vm326, %v325, %v276
        %vm328 = vcmask 523264
        %v329 = vsel %vm328, %v327, %v280
        %vm330 = vcmask 654336
        %v331 = vsel %vm330, %v329, %v284
        %vm332 = vcmask 785408
        %v333 = vsel %vm332, %v331, %v288
        %vm334 = vcmask 916480
        %v335 = vsel %vm334, %v333, %v292
        %v336 = vsel %vm322, %v230, %v296
        %v337 = vsel %vm324, %v336, %v300
        %v338 = vsel %vm326, %v337, %v304
        %v339 = vsel %vm328, %v338, %v308
        %v340 = vsel %vm330, %v339, %v312
        %v341 = vsel %vm332, %v340, %v316
        %v342 = vsel %vm334, %v341, %v320
        %v343 = vld [vmem:[%s2] sm:$0xff]
        %v344 = vld [vmem:[%s2 + $0x8] sm:$0xff]
        %v345 = vld [vmem:[%s2 + $0x10] sm:$0xff]
        %v346 = vld [vmem:[%s2 + $0x18] sm:$0xff]
        %v347 = vld [vmem:[%s2 + $0x20] sm:$0xff]
        %v348 = vld [vmem:[%s2 + $0x28] sm:$0xff]
        %v349 = vld [vmem:[%s2 + $0x30] sm:$0xff]
        %v350 = vld [vmem:[%s2 + $0x38] sm:$0xff]
        %v351 = vld [vmem:[%s2 + $0x40] sm:$0xff]
        %v352 = vld [vmem:[%s2 + $0x48] sm:$0xff]
        %v353 = vld [vmem:[%s2 + $0x50] sm:$0xff]
        %v354 = vld [vmem:[%s2 + $0x58] sm:$0xff]
        %v355 = vld [vmem:[%s2 + $0x60] sm:$0xff]
        %v356 = vld [vmem:[%s2 + $0x68] sm:$0xff]
        %v357 = vld [vmem:[%s2 + $0x70] sm:$0xff]
        %v358 = vld [vmem:[%s2 + $0x78] sm:$0xff]
        %v359 = vld [vmem:[%s2 + $0x80] sm:$0xff]
        %v360 = vld [vmem:[%s2 + $0x88] sm:$0xff]
        %v361 = vld [vmem:[%s2 + $0x90] sm:$0xff]
        %v362 = vld [vmem:[%s2 + $0x98] sm:$0xff]
        %v363 = vld [vmem:[%s2 + $0xa0] sm:$0xff]
        %v364 = vld [vmem:[%s2 + $0xa8] sm:$0xff]
        %v365 = vld [vmem:[%s2 + $0xb0] sm:$0xff]
        %v366 = vld [vmem:[%s2 + $0xb8] sm:$0xff]
        %v367 = vld [vmem:[%s2 + $0xc0] sm:$0xff]
        %v368 = vld [vmem:[%s2 + $0xc8] sm:$0xff]
        %v369 = vld [vmem:[%s2 + $0xd0] sm:$0xff]
        %v370 = vld [vmem:[%s2 + $0xd8] sm:$0xff]
        %v371 = vld [vmem:[%s2 + $0xe0] sm:$0xff]
        %v372 = vld [vmem:[%s2 + $0xe8] sm:$0xff]
        %v373 = vld [vmem:[%s2 + $0xf0] sm:$0xff]
        %v374 = vld [vmem:[%s2 + $0xf8] sm:$0xff]
        %375 = vmatprep.subr.mxu0 0.0
        %v376 = vand.u32 %v358, 4294901760
        %377 = vmatpush1.msra.mxu0 %v376
        %378 = vmatprep.subr.mxu0 0.0
        %v379 = vand.u32 %v357, 4294901760
        %380 = vmatpush1.msra.mxu0 %v379
        %381 = vmatprep.subr.mxu0 0.0
        %v382 = vand.u32 %v356, 4294901760
        %383 = vmatpush1.msra.mxu0 %v382
        %384 = vmatprep.subr.mxu0 0.0
        %v385 = vand.u32 %v355, 4294901760
        %386 = vmatpush1.msra.mxu0 %v385
        %387 = vmatprep.subr.mxu0 0.0
        %v388 = vand.u32 %v354, 4294901760
        %389 = vmatpush1.msra.mxu0 %v388
        %390 = vmatprep.subr.mxu0 0.0
        %v391 = vand.u32 %v353, 4294901760
        %392 = vmatpush1.msra.mxu0 %v391
        %393 = vmatprep.subr.mxu0 0.0
        %v394 = vand.u32 %v352, 4294901760
        %395 = vmatpush1.msra.mxu0 %v394
        %396 = vmatprep.subr.mxu0 0.0
        %v397 = vand.u32 %v351, 4294901760
        %398 = vmatpush1.msra.mxu0 %v397
        %399 = vmatprep.subr.mxu0 0.0
        %v400 = vand.u32 %v350, 4294901760
        %401 = vmatpush1.msra.mxu0 %v400
        %402 = vmatprep.subr.mxu0 0.0
        %v403 = vand.u32 %v349, 4294901760
        %404 = vmatpush1.msra.mxu0 %v403
        %405 = vmatprep.subr.mxu0 0.0
        %v406 = vand.u32 %v348, 4294901760
        %407 = vmatpush1.msra.mxu0 %v406
        %408 = vmatprep.subr.mxu0 0.0
        %v409 = vand.u32 %v347, 4294901760
        %410 = vmatpush1.msra.mxu0 %v409
        %411 = vmatprep.subr.mxu0 0.0
        %v412 = vand.u32 %v346, 4294901760
        %413 = vmatpush1.msra.mxu0 %v412
        %414 = vmatprep.subr.mxu0 0.0
        %v415 = vand.u32 %v345, 4294901760
        %416 = vmatpush1.msra.mxu0 %v415
        %417 = vmatprep.subr.mxu0 0.0
        %v418 = vand.u32 %v344, 4294901760
        %419 = vmatpush1.msra.mxu0 %v418
        %420 = vmatprep.subr.mxu0 0.0
        %v421 = vand.u32 %v343, 4294901760
        %422 = vmatpush1.msra.mxu0 %v421
        %423 = vmatprep.subr.mxu0 0.0
        %v424 = vand.u32 %v374, 4294901760
        %425 = vmatpush2.msra.mxu0 %v424
        %426 = vmatprep.subr.mxu0 0.0
        %v427 = vand.u32 %v373, 4294901760
        %428 = vmatpush2.msra.mxu0 %v427
        %429 = vmatprep.subr.mxu0 0.0
        %v430 = vand.u32 %v372, 4294901760
        %431 = vmatpush2.msra.mxu0 %v430
        %432 = vmatprep.subr.mxu0 0.0
        %v433 = vand.u32 %v371, 4294901760
        %434 = vmatpush2.msra.mxu0 %v433
        %435 = vmatprep.subr.mxu0 0.0
        %v436 = vand.u32 %v370, 4294901760
        %437 = vmatpush2.msra.mxu0 %v436
        %438 = vmatprep.subr.mxu0 0.0
        %v439 = vand.u32 %v369, 4294901760
        %440 = vmatpush2.msra.mxu0 %v439
        %441 = vmatprep.subr.mxu0 0.0
        %v442 = vand.u32 %v368, 4294901760
        %443 = vmatpush2.msra.mxu0 %v442
        %444 = vmatprep.subr.mxu0 0.0
        %v445 = vand.u32 %v367, 4294901760
        %446 = vmatpush2.msra.mxu0 %v445
        %447 = vmatprep.subr.mxu0 0.0
        %v448 = vand.u32 %v366, 4294901760
        %449 = vmatpush2.msra.mxu0 %v448
        %450 = vmatprep.subr.mxu0 0.0
        %v451 = vand.u32 %v365, 4294901760
        %452 = vmatpush2.msra.mxu0 %v451
        %453 = vmatprep.subr.mxu0 0.0
        %v454 = vand.u32 %v364, 4294901760
        %455 = vmatpush2.msra.mxu0 %v454
        %456 = vmatprep.subr.mxu0 0.0
        %v457 = vand.u32 %v363, 4294901760
        %458 = vmatpush2.msra.mxu0 %v457
        %459 = vmatprep.subr.mxu0 0.0
        %v460 = vand.u32 %v362, 4294901760
        %461 = vmatpush2.msra.mxu0 %v460
        %462 = vmatprep.subr.mxu0 0.0
        %v463 = vand.u32 %v361, 4294901760
        %464 = vmatpush2.msra.mxu0 %v463
        %465 = vmatprep.subr.mxu0 0.0
        %v466 = vand.u32 %v360, 4294901760
        %467 = vmatpush2.msra.mxu0 %v466
        %468 = vmatprep.subr.mxu0 0.0
        %v469 = vand.u32 %v359, 4294901760
        %470 = vmatpush2.msra.mxu0 %v469
        %v471 = vand.u32 %v342, 4294901760
        %v472 = vsub.f32 %v342, %v471
        %v473 = vand.u32 %v472, 4294901760
        %v474 = vsub.f32 %v472, %v473
        %v475 = vand.u32 %v474, 4294901760
        %476 = vmatprep.mubr.f32.mxu0 %v475
        %v477 = vand.u32 %v335, 4294901760
        %v478 = vsub.f32 %v335, %v477
        %v479 = vand.u32 %v478, 4294901760
        %v480 = vsub.f32 %v478, %v479
        %v481 = vand.u32 %v480, 4294901760
        %482 = vmatmul.mubr.f32.gmra.mxu0 %v481
        %v483 = vpop.f32.mrf.mxu0
        %v484 = vadd.f32 0.0, %v483
        %v485 = vpop.f32.mrf.mxu0
        %486 = vdwg.mxu0
        %487 = vmatprep.subr.mxu0 0.0
        %v488 = vand.u32 %v358, 4294901760
        %v489 = vsub.f32 %v358, %v488
        %v490 = vand.u32 %v489, 4294901760
        %v491 = vsub.f32 %v489, %v490
        %v492 = vand.u32 %v491, 4294901760
        %493 = vmatpush1.msra.mxu0 %v492
        %494 = vmatprep.subr.mxu0 0.0
        %v495 = vand.u32 %v357, 4294901760
        %v496 = vsub.f32 %v357, %v495
        %v497 = vand.u32 %v496, 4294901760
        %v498 = vsub.f32 %v496, %v497
        %v499 = vand.u32 %v498, 4294901760
        %500 = vmatpush1.msra.mxu0 %v499
        %501 = vmatprep.subr.mxu0 0.0
        %v502 = vand.u32 %v356, 4294901760
        %v503 = vsub.f32 %v356, %v502
        %v504 = vand.u32 %v503, 4294901760
        %v505 = vsub.f32 %v503, %v504
        %v506 = vand.u32 %v505, 4294901760
        %507 = vmatpush1.msra.mxu0 %v506
        %508 = vmatprep.subr.mxu0 0.0
        %v509 = vand.u32 %v355, 4294901760
        %v510 = vsub.f32 %v355, %v509
        %v511 = vand.u32 %v510, 4294901760
        %v512 = vsub.f32 %v510, %v511
        %v513 = vand.u32 %v512, 4294901760
        %514 = vmatpush1.msra.mxu0 %v513
        %515 = vmatprep.subr.mxu0 0.0
        %v516 = vand.u32 %v354, 4294901760
        %v517 = vsub.f32 %v354, %v516
        %v518 = vand.u32 %v517, 4294901760
        %v519 = vsub.f32 %v517, %v518
        %v520 = vand.u32 %v519, 4294901760
        %521 = vmatpush1.msra.mxu0 %v520
        %522 = vmatprep.subr.mxu0 0.0
        %v523 = vand.u32 %v353, 4294901760
        %v524 = vsub.f32 %v353, %v523
        %v525 = vand.u32 %v524, 4294901760
        %v526 = vsub.f32 %v524, %v525
        %v527 = vand.u32 %v526, 4294901760
        %528 = vmatpush1.msra.mxu0 %v527
        %529 = vmatprep.subr.mxu0 0.0
        %v530 = vand.u32 %v352, 4294901760
        %v531 = vsub.f32 %v352, %v530
        %v532 = vand.u32 %v531, 4294901760
        %v533 = vsub.f32 %v531, %v532
        %v534 = vand.u32 %v533, 4294901760
        %535 = vmatpush1.msra.mxu0 %v534
        %536 = vmatprep.subr.mxu0 0.0
        %v537 = vand.u32 %v351, 4294901760
        %v538 = vsub.f32 %v351, %v537
        %v539 = vand.u32 %v538, 4294901760
        %v540 = vsub.f32 %v538, %v539
        %v541 = vand.u32 %v540, 4294901760
        %542 = vmatpush1.msra.mxu0 %v541
        %543 = vmatprep.subr.mxu0 0.0
        %v544 = vand.u32 %v350, 4294901760
        %v545 = vsub.f32 %v350, %v544
        %v546 = vand.u32 %v545, 4294901760
        %v547 = vsub.f32 %v545, %v546
        %v548 = vand.u32 %v547, 4294901760
        %549 = vmatpush1.msra.mxu0 %v548
        %550 = vmatprep.subr.mxu0 0.0
        %v551 = vand.u32 %v349, 4294901760
        %v552 = vsub.f32 %v349, %v551
        %v553 = vand.u32 %v552, 4294901760
        %v554 = vsub.f32 %v552, %v553
        %v555 = vand.u32 %v554, 4294901760
        %556 = vmatpush1.msra.mxu0 %v555
        %557 = vmatprep.subr.mxu0 0.0
        %v558 = vand.u32 %v348, 4294901760
        %v559 = vsub.f32 %v348, %v558
        %v560 = vand.u32 %v559, 4294901760
        %v561 = vsub.f32 %v559, %v560
        %v562 = vand.u32 %v561, 4294901760
        %563 = vmatpush1.msra.mxu0 %v562
        %564 = vmatprep.subr.mxu0 0.0
        %v565 = vand.u32 %v347, 4294901760
        %v566 = vsub.f32 %v347, %v565
        %v567 = vand.u32 %v566, 4294901760
        %v568 = vsub.f32 %v566, %v567
        %v569 = vand.u32 %v568, 4294901760
        %570 = vmatpush1.msra.mxu0 %v569
        %571 = vmatprep.subr.mxu0 0.0
        %v572 = vand.u32 %v346, 4294901760
        %v573 = vsub.f32 %v346, %v572
        %v574 = vand.u32 %v573, 4294901760
        %v575 = vsub.f32 %v573, %v574
        %v576 = vand.u32 %v575, 4294901760
        %577 = vmatpush1.msra.mxu0 %v576
        %578 = vmatprep.subr.mxu0 0.0
        %v579 = vand.u32 %v345, 4294901760
        %v580 = vsub.f32 %v345, %v579
        %v581 = vand.u32 %v580, 4294901760
        %v582 = vsub.f32 %v580, %v581
        %v583 = vand.u32 %v582, 4294901760
        %584 = vmatpush1.msra.mxu0 %v583
        %585 = vmatprep.subr.mxu0 0.0
        %v586 = vand.u32 %v344, 4294901760
        %v587 = vsub.f32 %v344, %v586
        %v588 = vand.u32 %v587, 4294901760
        %v589 = vsub.f32 %v587, %v588
        %v590 = vand.u32 %v589, 4294901760
        %591 = vmatpush1.msra.mxu0 %v590
        %592 = vmatprep.subr.mxu0 0.0
        %v593 = vand.u32 %v343, 4294901760
        %v594 = vsub.f32 %v343, %v593
        %v595 = vand.u32 %v594, 4294901760
        %v596 = vsub.f32 %v594, %v595
        %v597 = vand.u32 %v596, 4294901760
        %598 = vmatpush1.msra.mxu0 %v597
        %599 = vmatprep.subr.mxu0 0.0
        %v600 = vand.u32 %v374, 4294901760
        %v601 = vsub.f32 %v374, %v600
        %v602 = vand.u32 %v601, 4294901760
        %v603 = vsub.f32 %v601, %v602
        %v604 = vand.u32 %v603, 4294901760
        %605 = vmatpush2.msra.mxu0 %v604
        %606 = vmatprep.subr.mxu0 0.0
        %v607 = vand.u32 %v373, 4294901760
        %v608 = vsub.f32 %v373, %v607
        %v609 = vand.u32 %v608, 4294901760
        %v610 = vsub.f32 %v608, %v609
        %v611 = vand.u32 %v610, 4294901760
        %612 = vmatpush2.msra.mxu0 %v611
        %613 = vmatprep.subr.mxu0 0.0
        %v614 = vand.u32 %v372, 4294901760
        %v615 = vsub.f32 %v372, %v614
        %v616 = vand.u32 %v615, 4294901760
        %v617 = vsub.f32 %v615, %v616
        %v618 = vand.u32 %v617, 4294901760
        %619 = vmatpush2.msra.mxu0 %v618
        %620 = vmatprep.subr.mxu0 0.0
        %v621 = vand.u32 %v371, 4294901760
        %v622 = vsub.f32 %v371, %v621
        %v623 = vand.u32 %v622, 4294901760
        %v624 = vsub.f32 %v622, %v623
        %v625 = vand.u32 %v624, 4294901760
        %626 = vmatpush2.msra.mxu0 %v625
        %627 = vmatprep.subr.mxu0 0.0
        %v628 = vand.u32 %v370, 4294901760
        %v629 = vsub.f32 %v370, %v628
        %v630 = vand.u32 %v629, 4294901760
        %v631 = vsub.f32 %v629, %v630
        %v632 = vand.u32 %v631, 4294901760
        %633 = vmatpush2.msra.mxu0 %v632
        %634 = vmatprep.subr.mxu0 0.0
        %v635 = vand.u32 %v369, 4294901760
        %v636 = vsub.f32 %v369, %v635
        %v637 = vand.u32 %v636, 4294901760
        %v638 = vsub.f32 %v636, %v637
        %v639 = vand.u32 %v638, 4294901760
        %640 = vmatpush2.msra.mxu0 %v639
        %641 = vmatprep.subr.mxu0 0.0
        %v642 = vand.u32 %v368, 4294901760
        %v643 = vsub.f32 %v368, %v642
        %v644 = vand.u32 %v643, 4294901760
        %v645 = vsub.f32 %v643, %v644
        %v646 = vand.u32 %v645, 4294901760
        %647 = vmatpush2.msra.mxu0 %v646
        %648 = vmatprep.subr.mxu0 0.0
        %v649 = vand.u32 %v367, 4294901760
        %v650 = vsub.f32 %v367, %v649
        %v651 = vand.u32 %v650, 4294901760
        %v652 = vsub.f32 %v650, %v651
        %v653 = vand.u32 %v652, 4294901760
        %654 = vmatpush2.msra.mxu0 %v653
        %655 = vmatprep.subr.mxu0 0.0
        %v656 = vand.u32 %v366, 4294901760
        %v657 = vsub.f32 %v366, %v656
        %v658 = vand.u32 %v657, 4294901760
        %v659 = vsub.f32 %v657, %v658
        %v660 = vand.u32 %v659, 4294901760
        %661 = vmatpush2.msra.mxu0 %v660
        %662 = vmatprep.subr.mxu0 0.0
        %v663 = vand.u32 %v365, 4294901760
        %v664 = vsub.f32 %v365, %v663
        %v665 = vand.u32 %v664, 4294901760
        %v666 = vsub.f32 %v664, %v665
        %v667 = vand.u32 %v666, 4294901760
        %668 = vmatpush2.msra.mxu0 %v667
        %669 = vmatprep.subr.mxu0 0.0
        %v670 = vand.u32 %v364, 4294901760
        %v671 = vsub.f32 %v364, %v670
        %v672 = vand.u32 %v671, 4294901760
        %v673 = vsub.f32 %v671, %v672
        %v674 = vand.u32 %v673, 4294901760
        %675 = vmatpush2.msra.mxu0 %v674
        %676 = vmatprep.subr.mxu0 0.0
        %v677 = vand.u32 %v363, 4294901760
        %v678 = vsub.f32 %v363, %v677
        %v679 = vand.u32 %v678, 4294901760
        %v680 = vsub.f32 %v678, %v679
        %v681 = vand.u32 %v680, 4294901760
        %682 = vmatpush2.msra.mxu0 %v681
        %683 = vmatprep.subr.mxu0 0.0
        %v684 = vand.u32 %v362, 4294901760
        %v685 = vsub.f32 %v362, %v684
        %v686 = vand.u32 %v685, 4294901760
        %v687 = vsub.f32 %v685, %v686
        %v688 = vand.u32 %v687, 4294901760
        %689 = vmatpush2.msra.mxu0 %v688
        %690 = vmatprep.subr.mxu0 0.0
        %v691 = vand.u32 %v361, 4294901760
        %v692 = vsub.f32 %v361, %v691
        %v693 = vand.u32 %v692, 4294901760
        %v694 = vsub.f32 %v692, %v693
        %v695 = vand.u32 %v694, 4294901760
        %696 = vmatpush2.msra.mxu0 %v695
        %697 = vmatprep.subr.mxu0 0.0
        %v698 = vand.u32 %v360, 4294901760
        %v699 = vsub.f32 %v360, %v698
        %v700 = vand.u32 %v699, 4294901760
        %v701 = vsub.f32 %v699, %v700
        %v702 = vand.u32 %v701, 4294901760
        %703 = vmatpush2.msra.mxu0 %v702
        %704 = vmatprep.subr.mxu0 0.0
        %v705 = vand.u32 %v359, 4294901760
        %v706 = vsub.f32 %v359, %v705
        %v707 = vand.u32 %v706, 4294901760
        %v708 = vsub.f32 %v706, %v707
        %v709 = vand.u32 %v708, 4294901760
        %710 = vmatpush2.msra.mxu0 %v709
        %v711 = vand.u32 %v342, 4294901760
        %712 = vmatprep.mubr.f32.mxu0 %v711
        %v713 = vand.u32 %v335, 4294901760
        %714 = vmatmul.mubr.f32.gmra.mxu0 %v713
        %v715 = vpop.f32.mrf.mxu0
        %v716 = vadd.f32 %v484, %v715
        %v717 = vpop.f32.mrf.mxu0
        %718 = vdwg.mxu0
        %719 = vmatprep.subr.mxu0 0.0
        %v720 = vand.u32 %v358, 4294901760
        %v721 = vsub.f32 %v358, %v720
        %722 = vmatpush1.msra.mxu0 %v721
        %723 = vmatprep.subr.mxu0 0.0
        %v724 = vand.u32 %v357, 4294901760
        %v725 = vsub.f32 %v357, %v724
        %726 = vmatpush1.msra.mxu0 %v725
        %727 = vmatprep.subr.mxu0 0.0
        %v728 = vand.u32 %v356, 4294901760
        %v729 = vsub.f32 %v356, %v728
        %730 = vmatpush1.msra.mxu0 %v729
        %731 = vmatprep.subr.mxu0 0.0
        %v732 = vand.u32 %v355, 4294901760
        %v733 = vsub.f32 %v355, %v732
        %734 = vmatpush1.msra.mxu0 %v733
        %735 = vmatprep.subr.mxu0 0.0
        %v736 = vand.u32 %v354, 4294901760
        %v737 = vsub.f32 %v354, %v736
        %738 = vmatpush1.msra.mxu0 %v737
        %739 = vmatprep.subr.mxu0 0.0
        %v740 = vand.u32 %v353, 4294901760
        %v741 = vsub.f32 %v353, %v740
        %742 = vmatpush1.msra.mxu0 %v741
        %743 = vmatprep.subr.mxu0 0.0
        %v744 = vand.u32 %v352, 4294901760
        %v745 = vsub.f32 %v352, %v744
        %746 = vmatpush1.msra.mxu0 %v745
        %747 = vmatprep.subr.mxu0 0.0
        %v748 = vand.u32 %v351, 4294901760
        %v749 = vsub.f32 %v351, %v748
        %750 = vmatpush1.msra.mxu0 %v749
        %751 = vmatprep.subr.mxu0 0.0
        %v752 = vand.u32 %v350, 4294901760
        %v753 = vsub.f32 %v350, %v752
        %754 = vmatpush1.msra.mxu0 %v753
        %755 = vmatprep.subr.mxu0 0.0
        %v756 = vand.u32 %v349, 4294901760
        %v757 = vsub.f32 %v349, %v756
        %758 = vmatpush1.msra.mxu0 %v757
        %759 = vmatprep.subr.mxu0 0.0
        %v760 = vand.u32 %v348, 4294901760
        %v761 = vsub.f32 %v348, %v760
        %762 = vmatpush1.msra.mxu0 %v761
        %763 = vmatprep.subr.mxu0 0.0
        %v764 = vand.u32 %v347, 4294901760
        %v765 = vsub.f32 %v347, %v764
        %766 = vmatpush1.msra.mxu0 %v765
        %767 = vmatprep.subr.mxu0 0.0
        %v768 = vand.u32 %v346, 4294901760
        %v769 = vsub.f32 %v346, %v768
        %770 = vmatpush1.msra.mxu0 %v769
        %771 = vmatprep.subr.mxu0 0.0
        %v772 = vand.u32 %v345, 4294901760
        %v773 = vsub.f32 %v345, %v772
        %774 = vmatpush1.msra.mxu0 %v773
        %775 = vmatprep.subr.mxu0 0.0
        %v776 = vand.u32 %v344, 4294901760
        %v777 = vsub.f32 %v344, %v776
        %778 = vmatpush1.msra.mxu0 %v777
        %779 = vmatprep.subr.mxu0 0.0
        %v780 = vand.u32 %v343, 4294901760
        %v781 = vsub.f32 %v343, %v780
        %782 = vmatpush1.msra.mxu0 %v781
        %783 = vmatprep.subr.mxu0 0.0
        %v784 = vand.u32 %v374, 4294901760
        %v785 = vsub.f32 %v374, %v784
        %786 = vmatpush2.msra.mxu0 %v785
        %787 = vmatprep.subr.mxu0 0.0
        %v788 = vand.u32 %v373, 4294901760
        %v789 = vsub.f32 %v373, %v788
        %790 = vmatpush2.msra.mxu0 %v789
        %791 = vmatprep.subr.mxu0 0.0
        %v792 = vand.u32 %v372, 4294901760
        %v793 = vsub.f32 %v372, %v792
        %794 = vmatpush2.msra.mxu0 %v793
        %795 = vmatprep.subr.mxu0 0.0
        %v796 = vand.u32 %v371, 4294901760
        %v797 = vsub.f32 %v371, %v796
        %798 = vmatpush2.msra.mxu0 %v797
        %799 = vmatprep.subr.mxu0 0.0
        %v800 = vand.u32 %v370, 4294901760
        %v801 = vsub.f32 %v370, %v800
        %802 = vmatpush2.msra.mxu0 %v801
        %803 = vmatprep.subr.mxu0 0.0
        %v804 = vand.u32 %v369, 4294901760
        %v805 = vsub.f32 %v369, %v804
        %806 = vmatpush2.msra.mxu0 %v805
        %807 = vmatprep.subr.mxu0 0.0
        %v808 = vand.u32 %v368, 4294901760
        %v809 = vsub.f32 %v368, %v808
        %810 = vmatpush2.msra.mxu0 %v809
        %811 = vmatprep.subr.mxu0 0.0
        %v812 = vand.u32 %v367, 4294901760
        %v813 = vsub.f32 %v367, %v812
        %814 = vmatpush2.msra.mxu0 %v813
        %815 = vmatprep.subr.mxu0 0.0
        %v816 = vand.u32 %v366, 4294901760
        %v817 = vsub.f32 %v366, %v816
        %818 = vmatpush2.msra.mxu0 %v817
        %819 = vmatprep.subr.mxu0 0.0
        %v820 = vand.u32 %v365, 4294901760
        %v821 = vsub.f32 %v365, %v820
        %822 = vmatpush2.msra.mxu0 %v821
        %823 = vmatprep.subr.mxu0 0.0
        %v824 = vand.u32 %v364, 4294901760
        %v825 = vsub.f32 %v364, %v824
        %826 = vmatpush2.msra.mxu0 %v825
        %827 = vmatprep.subr.mxu0 0.0
        %v828 = vand.u32 %v363, 4294901760
        %v829 = vsub.f32 %v363, %v828
        %830 = vmatpush2.msra.mxu0 %v829
        %831 = vmatprep.subr.mxu0 0.0
        %v832 = vand.u32 %v362, 4294901760
        %v833 = vsub.f32 %v362, %v832
        %834 = vmatpush2.msra.mxu0 %v833
        %835 = vmatprep.subr.mxu0 0.0
        %v836 = vand.u32 %v361, 4294901760
        %v837 = vsub.f32 %v361, %v836
        %838 = vmatpush2.msra.mxu0 %v837
        %839 = vmatprep.subr.mxu0 0.0
        %v840 = vand.u32 %v360, 4294901760
        %v841 = vsub.f32 %v360, %v840
        %842 = vmatpush2.msra.mxu0 %v841
        %843 = vmatprep.subr.mxu0 0.0
        %v844 = vand.u32 %v359, 4294901760
        %v845 = vsub.f32 %v359, %v844
        %846 = vmatpush2.msra.mxu0 %v845
        %v847 = vand.u32 %v342, 4294901760
        %v848 = vsub.f32 %v342, %v847
        %849 = vmatprep.mubr.f32.mxu0 %v848
        %v850 = vand.u32 %v335, 4294901760
        %v851 = vsub.f32 %v335, %v850
        %852 = vmatmul.mubr.f32.gmra.mxu0 %v851
        %v853 = vpop.f32.mrf.mxu0
        %v854 = vadd.f32 %v716, %v853
        %v855 = vpop.f32.mrf.mxu0
        %856 = vdwg.mxu0
        %857 = vmatprep.subr.mxu0 0.0
        %v858 = vand.u32 %v358, 4294901760
        %859 = vmatpush1.msra.mxu0 %v858
        %860 = vmatprep.subr.mxu0 0.0
        %v861 = vand.u32 %v357, 4294901760
        %862 = vmatpush1.msra.mxu0 %v861
        %863 = vmatprep.subr.mxu0 0.0
        %v864 = vand.u32 %v356, 4294901760
        %865 = vmatpush1.msra.mxu0 %v864
        %866 = vmatprep.subr.mxu0 0.0
        %v867 = vand.u32 %v355, 4294901760
        %868 = vmatpush1.msra.mxu0 %v867
        %869 = vmatprep.subr.mxu0 0.0
        %v870 = vand.u32 %v354, 4294901760
        %871 = vmatpush1.msra.mxu0 %v870
        %872 = vmatprep.subr.mxu0 0.0
        %v873 = vand.u32 %v353, 4294901760
        %874 = vmatpush1.msra.mxu0 %v873
        %875 = vmatprep.subr.mxu0 0.0
        %v876 = vand.u32 %v352, 4294901760
        %877 = vmatpush1.msra.mxu0 %v876
        %878 = vmatprep.subr.mxu0 0.0
        %v879 = vand.u32 %v351, 4294901760
        %880 = vmatpush1.msra.mxu0 %v879
        %881 = vmatprep.subr.mxu0 0.0
        %v882 = vand.u32 %v350, 4294901760
        %883 = vmatpush1.msra.mxu0 %v882
        %884 = vmatprep.subr.mxu0 0.0
        %v885 = vand.u32 %v349, 4294901760
        %886 = vmatpush1.msra.mxu0 %v885
        %887 = vmatprep.subr.mxu0 0.0
        %v888 = vand.u32 %v348, 4294901760
        %889 = vmatpush1.msra.mxu0 %v888
        %890 = vmatprep.subr.mxu0 0.0
        %v891 = vand.u32 %v347, 4294901760
        %892 = vmatpush1.msra.mxu0 %v891
        %893 = vmatprep.subr.mxu0 0.0
        %v894 = vand.u32 %v346, 4294901760
        %895 = vmatpush1.msra.mxu0 %v894
        %896 = vmatprep.subr.mxu0 0.0
        %v897 = vand.u32 %v345, 4294901760
        %898 = vmatpush1.msra.mxu0 %v897
        %899 = vmatprep.subr.mxu0 0.0
        %v900 = vand.u32 %v344, 4294901760
        %901 = vmatpush1.msra.mxu0 %v900
        %902 = vmatprep.subr.mxu0 0.0
        %v903 = vand.u32 %v343, 4294901760
        %904 = vmatpush1.msra.mxu0 %v903
        %905 = vmatprep.subr.mxu0 0.0
        %v906 = vand.u32 %v374, 4294901760
        %907 = vmatpush2.msra.mxu0 %v906
        %908 = vmatprep.subr.mxu0 0.0
        %v909 = vand.u32 %v373, 4294901760
        %910 = vmatpush2.msra.mxu0 %v909
        %911 = vmatprep.subr.mxu0 0.0
        %v912 = vand.u32 %v372, 4294901760
        %913 = vmatpush2.msra.mxu0 %v912
        %914 = vmatprep.subr.mxu0 0.0
        %v915 = vand.u32 %v371, 4294901760
        %916 = vmatpush2.msra.mxu0 %v915
        %917 = vmatprep.subr.mxu0 0.0
        %v918 = vand.u32 %v370, 4294901760
        %919 = vmatpush2.msra.mxu0 %v918
        %920 = vmatprep.subr.mxu0 0.0
        %v921 = vand.u32 %v369, 4294901760
        %922 = vmatpush2.msra.mxu0 %v921
        %923 = vmatprep.subr.mxu0 0.0
        %v924 = vand.u32 %v368, 4294901760
        %925 = vmatpush2.msra.mxu0 %v924
        %926 = vmatprep.subr.mxu0 0.0
        %v927 = vand.u32 %v367, 4294901760
        %928 = vmatpush2.msra.mxu0 %v927
        %929 = vmatprep.subr.mxu0 0.0
        %v930 = vand.u32 %v366, 4294901760
        %931 = vmatpush2.msra.mxu0 %v930
        %932 = vmatprep.subr.mxu0 0.0
        %v933 = vand.u32 %v365, 4294901760
        %934 = vmatpush2.msra.mxu0 %v933
        %935 = vmatprep.subr.mxu0 0.0
        %v936 = vand.u32 %v364, 4294901760
        %937 = vmatpush2.msra.mxu0 %v936
        %938 = vmatprep.subr.mxu0 0.0
        %v939 = vand.u32 %v363, 4294901760
        %940 = vmatpush2.msra.mxu0 %v939
        %941 = vmatprep.subr.mxu0 0.0
        %v942 = vand.u32 %v362, 4294901760
        %943 = vmatpush2.msra.mxu0 %v942
        %944 = vmatprep.subr.mxu0 0.0
        %v945 = vand.u32 %v361, 4294901760
        %946 = vmatpush2.msra.mxu0 %v945
        %947 = vmatprep.subr.mxu0 0.0
        %v948 = vand.u32 %v360, 4294901760
        %949 = vmatpush2.msra.mxu0 %v948
        %950 = vmatprep.subr.mxu0 0.0
        %v951 = vand.u32 %v359, 4294901760
        %952 = vmatpush2.msra.mxu0 %v951
        %v953 = vand.u32 %v342, 4294901760
        %v954 = vsub.f32 %v342, %v953
        %v955 = vand.u32 %v954, 4294901760
        %956 = vmatprep.mubr.f32.mxu0 %v955
        %v957 = vand.u32 %v335, 4294901760
        %v958 = vsub.f32 %v335, %v957
        %v959 = vand.u32 %v958, 4294901760
        %960 = vmatmul.mubr.f32.gmra.mxu0 %v959
        %v961 = vpop.f32.mrf.mxu0
        %v962 = vadd.f32 %v854, %v961
        %v963 = vpop.f32.mrf.mxu0
        %964 = vdwg.mxu0
        %965 = vmatprep.subr.mxu0 0.0
        %v966 = vand.u32 %v358, 4294901760
        %v967 = vsub.f32 %v358, %v966
        %v968 = vand.u32 %v967, 4294901760
        %969 = vmatpush1.msra.mxu0 %v968
        %970 = vmatprep.subr.mxu0 0.0
        %v971 = vand.u32 %v357, 4294901760
        %v972 = vsub.f32 %v357, %v971
        %v973 = vand.u32 %v972, 4294901760
        %974 = vmatpush1.msra.mxu0 %v973
        %975 = vmatprep.subr.mxu0 0.0
        %v976 = vand.u32 %v356, 4294901760
        %v977 = vsub.f32 %v356, %v976
        %v978 = vand.u32 %v977, 4294901760
        %979 = vmatpush1.msra.mxu0 %v978
        %980 = vmatprep.subr.mxu0 0.0
        %v981 = vand.u32 %v355, 4294901760
        %v982 = vsub.f32 %v355, %v981
        %v983 = vand.u32 %v982, 4294901760
        %984 = vmatpush1.msra.mxu0 %v983
        %985 = vmatprep.subr.mxu0 0.0
        %v986 = vand.u32 %v354, 4294901760
        %v987 = vsub.f32 %v354, %v986
        %v988 = vand.u32 %v987, 4294901760
        %989 = vmatpush1.msra.mxu0 %v988
        %990 = vmatprep.subr.mxu0 0.0
        %v991 = vand.u32 %v353, 4294901760
        %v992 = vsub.f32 %v353, %v991
        %v993 = vand.u32 %v992, 4294901760
        %994 = vmatpush1.msra.mxu0 %v993
        %995 = vmatprep.subr.mxu0 0.0
        %v996 = vand.u32 %v352, 4294901760
        %v997 = vsub.f32 %v352, %v996
        %v998 = vand.u32 %v997, 4294901760
        %999 = vmatpush1.msra.mxu0 %v998
        %1000 = vmatprep.subr.mxu0 0.0
        %v1001 = vand.u32 %v351, 4294901760
        %v1002 = vsub.f32 %v351, %v1001
        %v1003 = vand.u32 %v1002, 4294901760
        %1004 = vmatpush1.msra.mxu0 %v1003
        %1005 = vmatprep.subr.mxu0 0.0
        %v1006 = vand.u32 %v350, 4294901760
        %v1007 = vsub.f32 %v350, %v1006
        %v1008 = vand.u32 %v1007, 4294901760
        %1009 = vmatpush1.msra.mxu0 %v1008
        %1010 = vmatprep.subr.mxu0 0.0
        %v1011 = vand.u32 %v349, 4294901760
        %v1012 = vsub.f32 %v349, %v1011
        %v1013 = vand.u32 %v1012, 4294901760
        %1014 = vmatpush1.msra.mxu0 %v1013
        %1015 = vmatprep.subr.mxu0 0.0
        %v1016 = vand.u32 %v348, 4294901760
        %v1017 = vsub.f32 %v348, %v1016
        %v1018 = vand.u32 %v1017, 4294901760
        %1019 = vmatpush1.msra.mxu0 %v1018
        %1020 = vmatprep.subr.mxu0 0.0
        %v1021 = vand.u32 %v347, 4294901760
        %v1022 = vsub.f32 %v347, %v1021
        %v1023 = vand.u32 %v1022, 4294901760
        %1024 = vmatpush1.msra.mxu0 %v1023
        %1025 = vmatprep.subr.mxu0 0.0
        %v1026 = vand.u32 %v346, 4294901760
        %v1027 = vsub.f32 %v346, %v1026
        %v1028 = vand.u32 %v1027, 4294901760
        %1029 = vmatpush1.msra.mxu0 %v1028
        %1030 = vmatprep.subr.mxu0 0.0
        %v1031 = vand.u32 %v345, 4294901760
        %v1032 = vsub.f32 %v345, %v1031
        %v1033 = vand.u32 %v1032, 4294901760
        %1034 = vmatpush1.msra.mxu0 %v1033
        %1035 = vmatprep.subr.mxu0 0.0
        %v1036 = vand.u32 %v344, 4294901760
        %v1037 = vsub.f32 %v344, %v1036
        %v1038 = vand.u32 %v1037, 4294901760
        %1039 = vmatpush1.msra.mxu0 %v1038
        %1040 = vmatprep.subr.mxu0 0.0
        %v1041 = vand.u32 %v343, 4294901760
        %v1042 = vsub.f32 %v343, %v1041
        %v1043 = vand.u32 %v1042, 4294901760
        %1044 = vmatpush1.msra.mxu0 %v1043
        %1045 = vmatprep.subr.mxu0 0.0
        %v1046 = vand.u32 %v374, 4294901760
        %v1047 = vsub.f32 %v374, %v1046
        %v1048 = vand.u32 %v1047, 4294901760
        %1049 = vmatpush2.msra.mxu0 %v1048
        %1050 = vmatprep.subr.mxu0 0.0
        %v1051 = vand.u32 %v373, 4294901760
        %v1052 = vsub.f32 %v373, %v1051
        %v1053 = vand.u32 %v1052, 4294901760
        %1054 = vmatpush2.msra.mxu0 %v1053
        %1055 = vmatprep.subr.mxu0 0.0
        %v1056 = vand.u32 %v372, 4294901760
        %v1057 = vsub.f32 %v372, %v1056
        %v1058 = vand.u32 %v1057, 4294901760
        %1059 = vmatpush2.msra.mxu0 %v1058
        %1060 = vmatprep.subr.mxu0 0.0
        %v1061 = vand.u32 %v371, 4294901760
        %v1062 = vsub.f32 %v371, %v1061
        %v1063 = vand.u32 %v1062, 4294901760
        %1064 = vmatpush2.msra.mxu0 %v1063
        %1065 = vmatprep.subr.mxu0 0.0
        %v1066 = vand.u32 %v370, 4294901760
        %v1067 = vsub.f32 %v370, %v1066
        %v1068 = vand.u32 %v1067, 4294901760
        %1069 = vmatpush2.msra.mxu0 %v1068
        %1070 = vmatprep.subr.mxu0 0.0
        %v1071 = vand.u32 %v369, 4294901760
        %v1072 = vsub.f32 %v369, %v1071
        %v1073 = vand.u32 %v1072, 4294901760
        %1074 = vmatpush2.msra.mxu0 %v1073
        %1075 = vmatprep.subr.mxu0 0.0
        %v1076 = vand.u32 %v368, 4294901760
        %v1077 = vsub.f32 %v368, %v1076
        %v1078 = vand.u32 %v1077, 4294901760
        %1079 = vmatpush2.msra.mxu0 %v1078
        %1080 = vmatprep.subr.mxu0 0.0
        %v1081 = vand.u32 %v367, 4294901760
        %v1082 = vsub.f32 %v367, %v1081
        %v1083 = vand.u32 %v1082, 4294901760
        %1084 = vmatpush2.msra.mxu0 %v1083
        %1085 = vmatprep.subr.mxu0 0.0
        %v1086 = vand.u32 %v366, 4294901760
        %v1087 = vsub.f32 %v366, %v1086
        %v1088 = vand.u32 %v1087, 4294901760
        %1089 = vmatpush2.msra.mxu0 %v1088
        %1090 = vmatprep.subr.mxu0 0.0
        %v1091 = vand.u32 %v365, 4294901760
        %v1092 = vsub.f32 %v365, %v1091
        %v1093 = vand.u32 %v1092, 4294901760
        %1094 = vmatpush2.msra.mxu0 %v1093
        %1095 = vmatprep.subr.mxu0 0.0
        %v1096 = vand.u32 %v364, 4294901760
        %v1097 = vsub.f32 %v364, %v1096
        %v1098 = vand.u32 %v1097, 4294901760
        %1099 = vmatpush2.msra.mxu0 %v1098
        %1100 = vmatprep.subr.mxu0 0.0
        %v1101 = vand.u32 %v363, 4294901760
        %v1102 = vsub.f32 %v363, %v1101
        %v1103 = vand.u32 %v1102, 4294901760
        %1104 = vmatpush2.msra.mxu0 %v1103
        %1105 = vmatprep.subr.mxu0 0.0
        %v1106 = vand.u32 %v362, 4294901760
        %v1107 = vsub.f32 %v362, %v1106
        %v1108 = vand.u32 %v1107, 4294901760
        %1109 = vmatpush2.msra.mxu0 %v1108
        %1110 = vmatprep.subr.mxu0 0.0
        %v1111 = vand.u32 %v361, 4294901760
        %v1112 = vsub.f32 %v361, %v1111
        %v1113 = vand.u32 %v1112, 4294901760
        %1114 = vmatpush2.msra.mxu0 %v1113
        %1115 = vmatprep.subr.mxu0 0.0
        %v1116 = vand.u32 %v360, 4294901760
        %v1117 = vsub.f32 %v360, %v1116
        %v1118 = vand.u32 %v1117, 4294901760
        %1119 = vmatpush2.msra.mxu0 %v1118
        %1120 = vmatprep.subr.mxu0 0.0
        %v1121 = vand.u32 %v359, 4294901760
        %v1122 = vsub.f32 %v359, %v1121
        %v1123 = vand.u32 %v1122, 4294901760
        %1124 = vmatpush2.msra.mxu0 %v1123
        %v1125 = vand.u32 %v342, 4294901760
        %1126 = vmatprep.mubr.f32.mxu0 %v1125
        %v1127 = vand.u32 %v335, 4294901760
        %1128 = vmatmul.mubr.f32.gmra.mxu0 %v1127
        %v1129 = vpop.f32.mrf.mxu0
        %v1130 = vadd.f32 %v962, %v1129
        %v1131 = vpop.f32.mrf.mxu0
        %1132 = vdwg.mxu0
        %1133 = vmatprep.subr.mxu0 0.0
        %v1134 = vand.u32 %v358, 4294901760
        %1135 = vmatpush1.msra.mxu0 %v1134
        %1136 = vmatprep.subr.mxu0 0.0
        %v1137 = vand.u32 %v357, 4294901760
        %1138 = vmatpush1.msra.mxu0 %v1137
        %1139 = vmatprep.subr.mxu0 0.0
        %v1140 = vand.u32 %v356, 4294901760
        %1141 = vmatpush1.msra.mxu0 %v1140
        %1142 = vmatprep.subr.mxu0 0.0
        %v1143 = vand.u32 %v355, 4294901760
        %1144 = vmatpush1.msra.mxu0 %v1143
        %1145 = vmatprep.subr.mxu0 0.0
        %v1146 = vand.u32 %v354, 4294901760
        %1147 = vmatpush1.msra.mxu0 %v1146
        %1148 = vmatprep.subr.mxu0 0.0
        %v1149 = vand.u32 %v353, 4294901760
        %1150 = vmatpush1.msra.mxu0 %v1149
        %1151 = vmatprep.subr.mxu0 0.0
        %v1152 = vand.u32 %v352, 4294901760
        %1153 = vmatpush1.msra.mxu0 %v1152
        %1154 = vmatprep.subr.mxu0 0.0
        %v1155 = vand.u32 %v351, 4294901760
        %1156 = vmatpush1.msra.mxu0 %v1155
        %1157 = vmatprep.subr.mxu0 0.0
        %v1158 = vand.u32 %v350, 4294901760
        %1159 = vmatpush1.msra.mxu0 %v1158
        %1160 = vmatprep.subr.mxu0 0.0
        %v1161 = vand.u32 %v349, 4294901760
        %1162 = vmatpush1.msra.mxu0 %v1161
        %1163 = vmatprep.subr.mxu0 0.0
        %v1164 = vand.u32 %v348, 4294901760
        %1165 = vmatpush1.msra.mxu0 %v1164
        %1166 = vmatprep.subr.mxu0 0.0
        %v1167 = vand.u32 %v347, 4294901760
        %1168 = vmatpush1.msra.mxu0 %v1167
        %1169 = vmatprep.subr.mxu0 0.0
        %v1170 = vand.u32 %v346, 4294901760
        %1171 = vmatpush1.msra.mxu0 %v1170
        %1172 = vmatprep.subr.mxu0 0.0
        %v1173 = vand.u32 %v345, 4294901760
        %1174 = vmatpush1.msra.mxu0 %v1173
        %1175 = vmatprep.subr.mxu0 0.0
        %v1176 = vand.u32 %v344, 4294901760
        %1177 = vmatpush1.msra.mxu0 %v1176
        %1178 = vmatprep.subr.mxu0 0.0
        %v1179 = vand.u32 %v343, 4294901760
        %1180 = vmatpush1.msra.mxu0 %v1179
        %1181 = vmatprep.subr.mxu0 0.0
        %v1182 = vand.u32 %v374, 4294901760
        %1183 = vmatpush2.msra.mxu0 %v1182
        %1184 = vmatprep.subr.mxu0 0.0
        %v1185 = vand.u32 %v373, 4294901760
        %1186 = vmatpush2.msra.mxu0 %v1185
        %1187 = vmatprep.subr.mxu0 0.0
        %v1188 = vand.u32 %v372, 4294901760
        %1189 = vmatpush2.msra.mxu0 %v1188
        %1190 = vmatprep.subr.mxu0 0.0
        %v1191 = vand.u32 %v371, 4294901760
        %1192 = vmatpush2.msra.mxu0 %v1191
        %1193 = vmatprep.subr.mxu0 0.0
        %v1194 = vand.u32 %v370, 4294901760
        %1195 = vmatpush2.msra.mxu0 %v1194
        %1196 = vmatprep.subr.mxu0 0.0
        %v1197 = vand.u32 %v369, 4294901760
        %1198 = vmatpush2.msra.mxu0 %v1197
        %1199 = vmatprep.subr.mxu0 0.0
        %v1200 = vand.u32 %v368, 4294901760
        %1201 = vmatpush2.msra.mxu0 %v1200
        %1202 = vmatprep.subr.mxu0 0.0
        %v1203 = vand.u32 %v367, 4294901760
        %1204 = vmatpush2.msra.mxu0 %v1203
        %1205 = vmatprep.subr.mxu0 0.0
        %v1206 = vand.u32 %v366, 4294901760
        %1207 = vmatpush2.msra.mxu0 %v1206
        %1208 = vmatprep.subr.mxu0 0.0
        %v1209 = vand.u32 %v365, 4294901760
        %1210 = vmatpush2.msra.mxu0 %v1209
        %1211 = vmatprep.subr.mxu0 0.0
        %v1212 = vand.u32 %v364, 4294901760
        %1213 = vmatpush2.msra.mxu0 %v1212
        %1214 = vmatprep.subr.mxu0 0.0
        %v1215 = vand.u32 %v363, 4294901760
        %1216 = vmatpush2.msra.mxu0 %v1215
        %1217 = vmatprep.subr.mxu0 0.0
        %v1218 = vand.u32 %v362, 4294901760
        %1219 = vmatpush2.msra.mxu0 %v1218
        %1220 = vmatprep.subr.mxu0 0.0
        %v1221 = vand.u32 %v361, 4294901760
        %1222 = vmatpush2.msra.mxu0 %v1221
        %1223 = vmatprep.subr.mxu0 0.0
        %v1224 = vand.u32 %v360, 4294901760
        %1225 = vmatpush2.msra.mxu0 %v1224
        %1226 = vmatprep.subr.mxu0 0.0
        %v1227 = vand.u32 %v359, 4294901760
        %1228 = vmatpush2.msra.mxu0 %v1227
        %v1229 = vand.u32 %v342, 4294901760
        %1230 = vmatprep.mubr.f32.mxu0 %v1229
        %v1231 = vand.u32 %v335, 4294901760
        %1232 = vmatmul.mubr.f32.gmra.mxu0 %v1231
        %v1233 = vpop.f32.mrf.mxu0
        %v1234 = vadd.f32 %v1130, %v1233
        %v1235 = vpop.f32.mrf.mxu0
        %1236 = vdwg.mxu0
        %vm1237 = vcmask 424960
        %1238 = vst.msk [vmem:[%s174] sm:$0xff] %vm1237, %v1234
        %s1239 = sand.u32 %s98, 1
        %s1240 = scalar_lea.sflag [#allocation3], %s1239
        %s1241 = sand.u32 %s98, 1
        %s1242 = smul.addr %s1241, 8
        %s1243 = scalar_lea.vmem [#allocation2], %s1242
        // Predicated region
        $region33: #{tpu_custom_call.1} parent=31 // pred_check
          %p1244 = pneg %p108
        $region34: #{tpu_custom_call.1} parent=31 // pred_check_branch
          %1246 = sbr.rel (%p1244) target = $region36
        $region35: #{tpu_custom_call.1} parent=31 // pred_region
          %s1248 = ssub.s32 128, 128
          %1249 = vsyncadd %s1240, %s1248
          %s1250 = smul.addr %s17, 128
          %s1251 = scalar_lea.hbm %s3, %s1250
          %s1253 = sshll.u32 %s1243, 4
          %s1254 = int_to_ptr.vmem [resolvable:$true] %s1253
          %1256 = dma.vmem_to_hbm [thread:$0]  %s1254, 128, %s1251, %s1240
        $region36: #{tpu_custom_call.1} parent=31 // pred_fallthru
          _
      $region32: #{tpu_custom_call.1} parent=5 // pred_fallthru
        _
      %p1257 = scmp.le.s32.totalorder 2, %s12
      // Predicated region
      $region37: #{tpu_custom_call.1} parent=5 // pred_check
        %p1258 = pneg %p1257
      $region38: #{tpu_custom_call.1} parent=5 // pred_check_branch
        %1260 = sbr.rel (%p1258) target = $region40
      $region39: #{tpu_custom_call.1} parent=5 // pred_region
        %s1261 = ssub.s32 %s12, 2
        // Predicated region
        $region41: #{tpu_custom_call.1} parent=39 // pred_check
          %p1262 = pneg %p114
        $region42: #{tpu_custom_call.1} parent=39 // pred_check_branch
          %1264 = sbr.rel (%p1262) target = $region44
        $region43: #{tpu_custom_call.1} parent=39 // pred_region
          %s1265 = sand.u32 %s99, 1
          %s1266 = scalar_lea.sflag [#allocation3], %s1265
          %s1267 = sand.u32 %s99, 1
          %s1268 = smul.addr %s1267, 8
          %s1269 = scalar_lea.vmem [#allocation2], %s1268
          %1270 = dma.done %s1266, 128
        $region44: #{tpu_custom_call.1} parent=39 // pred_fallthru
          _
      $region40: #{tpu_custom_call.1} parent=5 // pred_fallthru
        _
    $region6: #{tpu_custom_call.1} parent=1 // loop_footer
      %s16 = sadd.s32 1, %s12
    $region7: #{tpu_custom_call.1} parent=1 // loop_footer_branch
      %11 = sbr.rel target = $region3
    $region8: #{tpu_custom_call.1} parent=1 // loop_exit
      _
    %1271 = vsyncpa [#allocation3], 1
    %s1272 = scalar_lea.sflag [#allocation3], 1
    %1273 = vsyncpa %s1272, 1

</llo_original>
